<compile_context>
chip_gen: v7x
topology: tpu7x:2x2x1
jax: 0.10.0
libtpu: 0.0.40
codegen_flags: <defaults>
</compile_context>

<pallas_src>
import functools

import jax
import jax.numpy as jnp
from jax import lax
from jax.experimental import pallas as pl
from jax.experimental.pallas import tpu as pltpu

_LANES = 128
_SUBLANES = 8


def _wmse_tile_kernel(out_ref, lab_ref, w_ref, part_ref):
    """Per-tile partial of sum_i diff_i^T W diff_i via a Gram contraction.

    sum_i diff_i^T W diff_i == sum_{j,k} W[j,k] * (diff^T diff)[j,k]
    """
    diff = out_ref[...] - lab_ref[...]            # keep input dtype (bf16-friendly)
    gram = lax.dot_general(                       # diff^T @ diff -> (D, D), MXU
        diff, diff,
        dimension_numbers=(((0,), (0,)), ((), ())),
        preferred_element_type=jnp.float32)
    partial = jnp.sum(w_ref[...].astype(jnp.float32) * gram)
    # Lane-dense splat of the per-tile scalar; the wrapper sums over tiles.
    part_ref[...] = jnp.full(part_ref.shape, partial, dtype=part_ref.dtype)


def _pick_tile_rows(n_rows, d, itemsize, vmem_budget_bytes=12 << 20):
    # Double-buffered working set: 2 inputs * 2 buffers * (tn * d * itemsize),
    # plus W resident (~2 * d*d*4).  Stay under the default scoped VMEM limit
    # (16 MiB v5e / 32 MiB v6e / 32 MiB v7x) with plenty of headroom.
    avail = max(vmem_budget_bytes - 2 * d * d * 4, 1 << 20)
    tn = avail // (4 * d * itemsize)
    tn = max(_SUBLANES, min(int(tn), 4096))
    tn = (tn // _SUBLANES) * _SUBLANES
    n_padded = ((n_rows + _SUBLANES - 1) // _SUBLANES) * _SUBLANES
    return max(_SUBLANES, min(tn, n_padded))


def weighted_mse_loss(outputs, labels, weighted_matrix, reduction="sum",
                      block_rows=None):
    if reduction not in ("sum", "mean"):
        raise NotImplementedError
    n, d = outputs.shape
    assert labels.shape == (n, d)
    assert weighted_matrix.shape == (d, d)

    itemsize = jnp.dtype(outputs.dtype).itemsize
    tn = block_rows if block_rows is not None else _pick_tile_rows(n, d, itemsize)
    tn = max(_SUBLANES, (int(tn) // _SUBLANES) * _SUBLANES)

    # Pad the batch to a multiple of the tile; zero rows contribute 0 to the sum.
    n_pad = (-n) % tn
    if n_pad:
        outputs = jnp.pad(outputs, ((0, n_pad), (0, 0)))
        labels = jnp.pad(labels, ((0, n_pad), (0, 0)))
    n_padded = n + n_pad
    num_tiles = n_padded // tn

    flops = 2 * n_padded * d * d + 2 * num_tiles * d * d
    bytes_accessed = (2 * n_padded * d * itemsize
                      + d * d * jnp.dtype(weighted_matrix.dtype).itemsize
                      + num_tiles * _SUBLANES * _LANES * 4)

    partials = pl.pallas_call(
        _wmse_tile_kernel,
        out_shape=jax.ShapeDtypeStruct((num_tiles, _SUBLANES, _LANES), jnp.float32),
        grid=(num_tiles,),
        in_specs=[
            pl.BlockSpec((tn, d), lambda i: (i, 0)),
            pl.BlockSpec((tn, d), lambda i: (i, 0)),
            pl.BlockSpec((d, d), lambda i: (0, 0)),   # same block every step -> fetched once
        ],
        out_specs=pl.BlockSpec((1, _SUBLANES, _LANES), lambda i: (i, 0, 0)),
        compiler_params=pltpu.CompilerParams(
            dimension_semantics=("parallel",),        # independent tiles -> both TCs on v7x
            vmem_limit_bytes=32 << 20),
        cost_estimate=pl.CostEstimate(
            flops=int(flops), transcendentals=0, bytes_accessed=int(bytes_accessed)),
    )(outputs, labels, weighted_matrix)

    total = jnp.sum(partials[:, 0, 0])
    if reduction == "mean":
        # Mean over the batch rows (matches torch.mean(loss, dim=0) on a length-N vector).
        total = total / jnp.float32(n)
    return total


def weighted_mse_loss_ref(outputs, labels, weighted_matrix, reduction="sum"):
    diff = outputs - labels
    loss = jnp.einsum("ij,jk,ik->i", diff, weighted_matrix, diff)
    return jnp.sum(loss) if reduction == "sum" else jnp.mean(loss)


if __name__ == "__main__":
    key = jax.random.PRNGKey(0)
    k1, k2, k3 = jax.random.split(key, 3)

    D = 32
    A = jax.random.normal(k3, (D, D), dtype=jnp.float32)
    weighted_matrix = (A @ A.T) / D  # deterministic, symmetric PSD-ish

    ok = True
    # Case 1: batch divisible by the tile (exercises a 4-step parallel grid).
    # Case 2: ragged batch (exercises the zero-padding path).
    for N, block_rows in ((64, 16), (50, 16)):
        kq, kl = jax.random.split(jax.random.fold_in(k1, N))
        outputs = jax.random.normal(kq, (N, D), dtype=jnp.float32)
        labels = jax.random.normal(kl, (N, D), dtype=jnp.float32)
        for reduction in ("sum", "mean"):
            got = weighted_mse_loss(outputs, labels, weighted_matrix,
                                    reduction=reduction, block_rows=block_rows)
            got = jax.block_until_ready(got)
            want = weighted_mse_loss_ref(outputs, labels, weighted_matrix, reduction)
            if not jnp.allclose(got, want, rtol=1e-4, atol=1e-4):
                ok = False
                print(f"MISMATCH N={N} reduction={reduction}: got={got} want={want}")

    if ok:
        print("KERNEL_OK")
</pallas_src>

<mosaic_0001>
module attributes {stable_mosaic.version = 11 : i64} {
  func.func @_wmse_tile_kernel(%arg0: i32, %arg1: memref<16x32xf32, #tpu.memory_space<vmem>>, %arg2: memref<16x32xf32, #tpu.memory_space<vmem>>, %arg3: memref<32x32xf32, #tpu.memory_space<vmem>>, %arg4: memref<1x8x128xf32, #tpu.memory_space<vmem>>) attributes {dimension_semantics = [#tpu.dimension_semantics<parallel>], iteration_bounds = array<i64: 4>, scalar_prefetch = 0 : i64, scratch_operands = 0 : i64, tpu.core_type = #tpu.core_type<tc>, window_params = [{transform_indices = @transform_0, window_bounds = array<i64: 16, 32>}, {transform_indices = @transform_1, window_bounds = array<i64: 16, 32>}, {pipeline_mode = #tpu.pipeline_mode<synchronous>, transform_indices = @transform_2, window_bounds = array<i64: 32, 32>}, {transform_indices = @transform_3, window_bounds = array<i64: 1, 8, 128>}]} {
    %c0 = arith.constant 0 : index
    %c0_0 = arith.constant 0 : index
    %0 = vector.load %arg1[%c0, %c0_0] : memref<16x32xf32, #tpu.memory_space<vmem>>, vector<16x32xf32>
    %c0_1 = arith.constant 0 : index
    %c0_2 = arith.constant 0 : index
    %1 = vector.load %arg2[%c0_1, %c0_2] : memref<16x32xf32, #tpu.memory_space<vmem>>, vector<16x32xf32>
    %2 = arith.subf %0, %1 : vector<16x32xf32>
    %cst = arith.constant dense<0.000000e+00> : vector<32x32xf32>
    %3 = tpu.matmul %2, %2, %cst {dimension_numbers = #tpu.dot_dimension_numbers<[0], [0], [1], [1], [0, 1, 1, 1], [], []>} : vector<16x32xf32>, vector<16x32xf32>, vector<32x32xf32> -> vector<32x32xf32>
    %c0_3 = arith.constant 0 : index
    %c0_4 = arith.constant 0 : index
    %4 = vector.load %arg3[%c0_3, %c0_4] : memref<32x32xf32, #tpu.memory_space<vmem>>, vector<32x32xf32>
    %5 = arith.mulf %4, %3 : vector<32x32xf32>
    %6 = vector.shape_cast %5 : vector<32x32xf32> to vector<1x32x32xf32>
    %cst_5 = arith.constant dense<0.000000e+00> : vector<1xf32>
    %7 = vector.multi_reduction <add>, %6, %cst_5 [1, 2] : vector<1x32x32xf32> to vector<1xf32>
    %8 = vector.shape_cast %7 : vector<1xf32> to vector<1x1x1xf32>
    %9 = vector.extract %8[0, 0, 0] : f32 from vector<1x1x1xf32>
    %10 = vector.broadcast %9 : f32 to vector<1x8x128xf32>
    %c0_6 = arith.constant 0 : index
    %c0_7 = arith.constant 0 : index
    %c0_8 = arith.constant 0 : index
    %11 = vector.load %arg4[%c0_6, %c0_7, %c0_8] : memref<1x8x128xf32, #tpu.memory_space<vmem>>, vector<1x8x128xf32>
    tpu.vector_store %arg4[%c0_6, %c0_7, %c0_8], %10 {strides = array<i32>} : memref<1x8x128xf32, #tpu.memory_space<vmem>>, vector<1x8x128xf32>,
    return
  }
  func.func @transform_0(%arg0: i32) -> (i32, i32) {
    %c0_i32 = arith.constant 0 : i32
    %c0_i32_0 = arith.constant 0 : i32
    return %arg0, %c0_i32 : i32, i32
  }
  func.func @transform_1(%arg0: i32) -> (i32, i32) {
    %c0_i32 = arith.constant 0 : i32
    %c0_i32_0 = arith.constant 0 : i32
    return %arg0, %c0_i32 : i32, i32
  }
  func.func @transform_2(%arg0: i32) -> (i32, i32) {
    %c0_i32 = arith.constant 0 : i32
    %c0_i32_0 = arith.constant 0 : i32
    %c0_i32_1 = arith.constant 0 : i32
    return %c0_i32, %c0_i32_0 : i32, i32
  }
  func.func @transform_3(%arg0: i32) -> (i32, i32, i32) {
    %c0_i32 = arith.constant 0 : i32
    %c0_i32_0 = arith.constant 0 : i32
    %c0_i32_1 = arith.constant 0 : i32
    return %arg0, %c0_i32, %c0_i32_0 : i32, i32, i32
  }
}

</mosaic_0001>

<llo_original>
// kernel: tpu_custom_call.1
$region0: #{tpu_custom_call.1}
  #allocation0 [shape = 'u32[]', space=smem, size = 0x4, offset = 0x4, fixed_abs, tag = 'smem constant byte address 0x4 - core index']
  #allocation1 [shape = 'u32[144,128]{1,0:T(1,128)}', space=vmem, size = 0x12000, scoped, tag = 'internal scratch']
  %s0 = inlined_call_operand.vmem [shape: f32[64,32], index: 0, kind: input, shape index: {}]
  %s1 = inlined_call_operand.vmem [shape: f32[64,32], index: 1, kind: input, shape index: {}]
  %s2 = inlined_call_operand.vmem [shape: f32[32,32], index: 2, kind: input, shape index: {}]
  %s3 = inlined_call_operand.hbm [shape: f32[4,8,128], index: 3, kind: output, shape index: {}]
  %s4 = sld [smem:[#allocation0]]
  $region45: #{tpu_custom_call.1} parent=0
    _
  %s6 = ssub.s32 1, %s4
  %s7 = scalar_select 0, %s6, %s4
  $region1: #{tpu_custom_call.1} parent=0
    #allocation2 [shape = 'u8[8192]{0}', space=vmem, size = 0x2000, scoped, tag = 'output window, operand 0']
    #allocation3 [shape = 's32[2]{0}', space=sflag, size = 0x8, scoped, tag = 'scoped memory for tpu_custom_call.1']
    %8 = vsyncpa [#allocation3], 0
    %s9 = scalar_lea.sflag [#allocation3], 1
    %10 = vsyncpa %s9, 0
    loop: start=0, step=1, limit=6
    $region2: #{tpu_custom_call.1} parent=1 // loop_pre_header
      _
    $region3: #{tpu_custom_call.1} parent=1 // loop_header
      %s12 = sphi 0, %s16
      %p13 = scmp.ge.s32.totalorder %s12, 6
      %s22 = sphi 0, %s24
      %s25 = sphi 0, %s22
      %s26 = sphi 0, %s25
      %s42 = sphi 0, %s26
      %s48 = sphi 0, %s50
      %s51 = sphi 0, %s48
      %s52 = sphi 0, %s51
      %s68 = sphi 0, %s52
      %s72 = sphi 0, %s72
      %s74 = sphi 0, %s72
      %s75 = sphi 0, %s74
      %s89 = sphi 0, %s75
      %s95 = sphi 0, %s97
      %s98 = sphi 0, %s95
      %s99 = sphi 0, %s98
      %s115 = sphi 0, %s99
    $region4: #{tpu_custom_call.1} parent=1 // loop_header_branch
      %15 = sbr.rel (%p13) target = $region8
    $region5: #{tpu_custom_call.1} parent=1 // loop_body
      %s17 = ssub.s32 %s12, 1
      %s18 = ssub.s32 %s12, 2
      %s19 = sadd.s32 %s12, 1
      %s20 = ssub.s32 %s12, %s19
      %p21 = scmp.eq.s32.totalorder %s20, 0
      %s23 = sadd.s32 %s22, 1
      %s24 = scalar_select %p21, %s22, %s23
      %p27 = pneg %p21
      %p28 = scmp.eq.s32.totalorder %s12, 3
      %p29 = por %p27, %p28
      %p30 = scmp.ne.s32.totalorder %s22, %s25
      %p31 = scmp.eq.s32.totalorder %s12, 0
      %p32 = por %p30, %p31
      %p33 = scmp.ne.s32.totalorder %s22, %s25
      %p34 = scmp.eq.s32.totalorder %s17, 3
      %p35 = por %p33, %p34
      %p36 = scmp.ne.s32.totalorder %s25, %s26
      %p37 = scmp.eq.s32.totalorder %s17, 0
      %p38 = por %p36, %p37
      %p39 = scmp.ne.s32.totalorder %s25, %s26
      %p40 = scmp.eq.s32.totalorder %s18, 3
      %p41 = por %p39, %p40
      %p43 = scmp.ne.s32.totalorder %s26, %s42
      %p44 = scmp.eq.s32.totalorder %s18, 0
      %p45 = por %p43, %p44
      %s46 = ssub.s32 %s12, %s19
      %p47 = scmp.eq.s32.totalorder %s46, 0
      %s49 = sadd.s32 %s48, 1
      %s50 = scalar_select %p47, %s48, %s49
      %p53 = pneg %p47
      %p54 = scmp.eq.s32.totalorder %s12, 3
      %p55 = por %p53, %p54
      %p56 = scmp.ne.s32.totalorder %s48, %s51
      %p57 = scmp.eq.s32.totalorder %s12, 0
      %p58 = por %p56, %p57
      %p59 = scmp.ne.s32.totalorder %s48, %s51
      %p60 = scmp.eq.s32.totalorder %s17, 3
      %p61 = por %p59, %p60
      %p62 = scmp.ne.s32.totalorder %s51, %s52
      %p63 = scmp.eq.s32.totalorder %s17, 0
      %p64 = por %p62, %p63
      %p65 = scmp.ne.s32.totalorder %s51, %s52
      %p66 = scmp.eq.s32.totalorder %s18, 3
      %p67 = por %p65, %p66
      %p69 = scmp.ne.s32.totalorder %s52, %s68
      %p70 = scmp.eq.s32.totalorder %s18, 0
      %p71 = por %p69, %p70
      %s73 = sadd.s32 %s72, 1
      %p76 = scmp.eq.s32.totalorder %s12, 3
      %p77 = scmp.ne.s32.totalorder %s72, %s74
      %p78 = scmp.eq.s32.totalorder %s12, 0
      %p79 = por %p77, %p78
      %p80 = scmp.ne.s32.totalorder %s72, %s74
      %p81 = scmp.eq.s32.totalorder %s17, 3
      %p82 = por %p80, %p81
      %p83 = scmp.ne.s32.totalorder %s74, %s75
      %p84 = scmp.eq.s32.totalorder %s17, 0
      %p85 = por %p83, %p84
      %p86 = scmp.ne.s32.totalorder %s74, %s75
      %p87 = scmp.eq.s32.totalorder %s18, 3
      %p88 = por %p86, %p87
      %p90 = scmp.ne.s32.totalorder %s75, %s89
      %p91 = scmp.eq.s32.totalorder %s18, 0
      %p92 = por %p90, %p91
      %s93 = ssub.s32 %s12, %s19
      %p94 = scmp.eq.s32.totalorder %s93, 0
      %s96 = sadd.s32 %s95, 1
      %s97 = scalar_select %p94, %s95, %s96
      %p100 = pneg %p94
      %p101 = scmp.eq.s32.totalorder %s12, 3
      %p102 = por %p100, %p101
      %p103 = scmp.ne.s32.totalorder %s95, %s98
      %p104 = scmp.eq.s32.totalorder %s12, 0
      %p105 = por %p103, %p104
      %p106 = scmp.ne.s32.totalorder %s95, %s98
      %p107 = scmp.eq.s32.totalorder %s17, 3
      %p108 = por %p106, %p107
      %p109 = scmp.ne.s32.totalorder %s98, %s99
      %p110 = scmp.eq.s32.totalorder %s17, 0
      %p111 = por %p109, %p110
      %p112 = scmp.ne.s32.totalorder %s98, %s99
      %p113 = scmp.eq.s32.totalorder %s18, 3
      %p114 = por %p112, %p113
      %p116 = scmp.ne.s32.totalorder %s99, %s115
      %p117 = scmp.eq.s32.totalorder %s18, 0
      %p118 = por %p116, %p117
      %p119 = scmp.le.s32.totalorder 1, %s12
      %p120 = scmp.lt.s32.totalorder %s12, 5
      %p121 = pnand %p119, %p120
      %p122 = pneg %p121
      // Predicated region
      $region9: #{tpu_custom_call.1} parent=5 // pred_check
        _
      $region10: #{tpu_custom_call.1} parent=5 // pred_check_branch
        %124 = sbr.rel (%p121) target = $region12
      $region11: #{tpu_custom_call.1} parent=5 // pred_region
        %s125 = ssub.s32 %s12, 1
        // Predicated region
        $region13: #{tpu_custom_call.1} parent=11 // pred_check
          %p126 = pneg %p85
        $region14: #{tpu_custom_call.1} parent=11 // pred_check_branch
          %128 = sbr.rel (%p126) target = $region16
        $region15: #{tpu_custom_call.1} parent=11 // pred_region
          _
        $region16: #{tpu_custom_call.1} parent=11 // pred_fallthru
          _
      $region12: #{tpu_custom_call.1} parent=5 // pred_fallthru
        _
      %p129 = scmp.lt.s32.totalorder %s12, 4
      // Predicated region
      $region17: #{tpu_custom_call.1} parent=5 // pred_check
        %p130 = pneg %p129
      $region18: #{tpu_custom_call.1} parent=5 // pred_check_branch
        %132 = sbr.rel (%p130) target = $region20
      $region19: #{tpu_custom_call.1} parent=5 // pred_region
        // Predicated region
        $region21: #{tpu_custom_call.1} parent=19 // pred_check
          %p133 = pneg %p32
        $region22: #{tpu_custom_call.1} parent=19 // pred_check_branch
          %135 = sbr.rel (%p133) target = $region24
        $region23: #{tpu_custom_call.1} parent=19 // pred_region
          %s136 = smul.u32 2, %s12
          %p137 = scmp.lt.s32.totalorder %s136, 7
          %s138 = scalar_select %p137, %s136, 7
          %s139 = smul.addr %s138, 8
          %s140 = scalar_lea.vmem %s0, %s139
          %s141 = smul.u32 2, %s12
        $region24: #{tpu_custom_call.1} parent=19 // pred_fallthru
          _
        // Predicated region
        $region25: #{tpu_custom_call.1} parent=19 // pred_check
          %p142 = pneg %p58
        $region26: #{tpu_custom_call.1} parent=19 // pred_check_branch
          %144 = sbr.rel (%p142) target = $region28
        $region27: #{tpu_custom_call.1} parent=19 // pred_region
          %s145 = smul.u32 2, %s12
          %p146 = scmp.lt.s32.totalorder %s145, 7
          %s147 = scalar_select %p146, %s145, 7
          %s148 = smul.addr %s147, 8
          %s149 = scalar_lea.vmem %s1, %s148
          %s150 = smul.u32 2, %s12
        $region28: #{tpu_custom_call.1} parent=19 // pred_fallthru
          _
      $region20: #{tpu_custom_call.1} parent=5 // pred_fallthru
        _
      %p151 = scmp.le.s32.totalorder 1, %s12
      %p152 = scmp.lt.s32.totalorder %s12, 5
      %p153 = pnand %p151, %p152
      %p154 = pneg %p153
      // Predicated region
      $region29: #{tpu_custom_call.1} parent=5 // pred_check
        _
      $region30: #{tpu_custom_call.1} parent=5 // pred_check_branch
        %156 = sbr.rel (%p153) target = $region32
      $region31: #{tpu_custom_call.1} parent=5 // pred_region
        %s157 = ssub.s32 %s12, 1
        %s158 = smul.u32 2, %s17
        %p159 = scmp.lt.s32.totalorder %s158, 7
        %s160 = scalar_select %p159, %s158, 7
        %s161 = smul.addr %s160, 8
        %s162 = scalar_lea.vmem %s0, %s161
        %p163 = pneg %p38
        %p164 = pneg %p35
        %s165 = smul.u32 2, %s17
        %p166 = scmp.lt.s32.totalorder %s165, 7
        %s167 = scalar_select %p166, %s165, 7
        %s168 = smul.addr %s167, 8
        %s169 = scalar_lea.vmem %s1, %s168
        %p170 = pneg %p64
        %p171 = pneg %p61
        %p172 = pneg %p85
        %p173 = pneg %p82
        %p174 = pneg %p111
        %p175 = pneg %p108
        %s176 = sand.u32 %s98, 1
        %s177 = scalar_lea.sflag [#allocation3], %s176
        %s178 = sand.u32 %s98, 1
        %s179 = smul.addr %s178, 8
        %s180 = scalar_lea.vmem [#allocation2], %s179
        %s181 = smul.u32 2, %s17
        %p182 = scmp.lt.s32.totalorder %s181, 7
        %s183 = scalar_select %p182, %s181, 7
        %s184 = smul.addr %s183, 8
        %s185 = scalar_lea.vmem %s0, %s184
        %s186 = smul.u32 2, %s17
        %s187 = smul.u32 2, %s17
        %p188 = scmp.lt.s32.totalorder %s187, 7
        %s189 = scalar_select %p188, %s187, 7
        %s190 = smul.addr %s189, 8
        %s191 = scalar_lea.vmem %s1, %s190
        %s192 = smul.u32 2, %s17
        %v193 = vld [vmem:[%s185] sm:$0xff]
        %v194 = vld [vmem:[%s185 + $0x8] sm:$0xff]
        %v195 = vld [vmem:[%s191] sm:$0xff]
        %v196 = vld [vmem:[%s191 + $0x8] sm:$0xff]
        %v197 = vsub.f32 %v193, %v195
        %v198 = vsub.f32 %v194, %v196
        %199 = vxpose.xlu0.b32.start [1/16] %v197, 128
        %200 = vxpose.xlu0.b32.cont [2/16] %v198, 128
        %201 = vxpose.xlu0.b32.cont [3/16] 0.0, 128
        %202 = vxpose.xlu0.b32.cont [4/16] 0.0, 128
        %203 = vxpose.xlu0.b32.cont [5/16] 0.0, 128
        %204 = vxpose.xlu0.b32.cont [6/16] 0.0, 128
        %205 = vxpose.xlu0.b32.cont [7/16] 0.0, 128
        %206 = vxpose.xlu0.b32.cont [8/16] 0.0, 128
        %207 = vxpose.xlu0.b32.cont [9/16] 0.0, 128
        %208 = vxpose.xlu0.b32.cont [10/16] 0.0, 128
        %209 = vxpose.xlu0.b32.cont [11/16] 0.0, 128
        %210 = vxpose.xlu0.b32.cont [12/16] 0.0, 128
        %211 = vxpose.xlu0.b32.cont [13/16] 0.0, 128
        %212 = vxpose.xlu0.b32.cont [14/16] 0.0, 128
        %213 = vxpose.xlu0.b32.cont [15/16] 0.0, 128
        %214 = vxpose.xlu0.b32.end [16/16] 0.0, 128
        %v215 = vpop.trf.xlu0
        %v216 = vpop.trf.xlu0
        %v217 = vpop.trf.xlu0
        %v218 = vpop.trf.xlu0
        %v219 = vpop.trf.xlu0
        %v220 = vpop.trf.xlu0
        %v221 = vpop.trf.xlu0
        %v222 = vpop.trf.xlu0
        %v223 = vpop.trf.xlu0
        %v224 = vpop.trf.xlu0
        %v225 = vpop.trf.xlu0
        %v226 = vpop.trf.xlu0
        %v227 = vpop.trf.xlu0
        %v228 = vpop.trf.xlu0
        %v229 = vpop.trf.xlu0
        %v230 = vpop.trf.xlu0
        %vm231 = vcmask 130048
        %v233 = vsel %vm231, %v215, 0
        %v236 = vsel %vm231, %v216, 0
        %v239 = vsel %vm231, %v217, 0
        %v242 = vsel %vm231, %v218, 0
        %244 = vmatprep.subr.mxu0 0.0
        %245 = vmatpush1.msra.mxu0 %v197
        %246 = vmatprep.subr.mxu0 0.0
        %247 = vmatpush1.msra.mxu0 %v198
        %248 = vmatprep.subr.mxu0 0.0
        %249 = vmatpush1.msra.mxu0 0.0
        %250 = vmatprep.subr.mxu0 0.0
        %251 = vmatpush1.msra.mxu0 0.0
        %252 = vmatprep.subr.mxu0 0.0
        %253 = vmatpush1.msra.mxu0 0.0
        %254 = vmatprep.subr.mxu0 0.0
        %255 = vmatpush1.msra.mxu0 0.0
        %256 = vmatprep.subr.mxu0 0.0
        %257 = vmatpush1.msra.mxu0 0.0
        %258 = vmatprep.subr.mxu0 0.0
        %259 = vmatpush1.msra.mxu0 0.0
        %260 = vmatprep.subr.mxu0 0.0
        %261 = vmatpush1.msra.mxu0 0.0
        %262 = vmatprep.subr.mxu0 0.0
        %263 = vmatpush1.msra.mxu0 0.0
        %264 = vmatprep.subr.mxu0 0.0
        %265 = vmatpush1.msra.mxu0 0.0
        %266 = vmatprep.subr.mxu0 0.0
        %267 = vmatpush1.msra.mxu0 0.0
        %268 = vmatprep.subr.mxu0 0.0
        %269 = vmatpush1.msra.mxu0 0.0
        %270 = vmatprep.subr.mxu0 0.0
        %271 = vmatpush1.msra.mxu0 0.0
        %272 = vmatprep.subr.mxu0 0.0
        %273 = vmatpush1.msra.mxu0 0.0
        %274 = vmatprep.subr.mxu0 0.0
        %275 = vmatpush1.msra.mxu0 0.0
        %276 = vmatprep.subr.mxu0 0.0
        %277 = vmatpush1.msra.mxu0 0.0
        %278 = vmatprep.subr.mxu0 0.0
        %279 = vmatpush1.msra.mxu0 0.0
        %280 = vmatprep.subr.mxu0 0.0
        %281 = vmatpush1.msra.mxu0 0.0
        %282 = vmatprep.subr.mxu0 0.0
        %283 = vmatpush1.msra.mxu0 0.0
        %284 = vmatprep.subr.mxu0 0.0
        %285 = vmatpush1.msra.mxu0 0.0
        %286 = vmatprep.subr.mxu0 0.0
        %287 = vmatpush1.msra.mxu0 0.0
        %288 = vmatprep.subr.mxu0 0.0
        %289 = vmatpush1.msra.mxu0 0.0
        %290 = vmatprep.subr.mxu0 0.0
        %291 = vmatpush1.msra.mxu0 0.0
        %292 = vmatprep.subr.mxu0 0.0
        %293 = vmatpush1.msra.mxu0 0.0
        %294 = vmatprep.subr.mxu0 0.0
        %295 = vmatpush1.msra.mxu0 0.0
        %296 = vmatprep.subr.mxu0 0.0
        %297 = vmatpush1.msra.mxu0 0.0
        %298 = vmatprep.subr.mxu0 0.0
        %299 = vmatpush1.msra.mxu0 0.0
        %300 = vmatprep.subr.mxu0 0.0
        %301 = vmatpush1.msra.mxu0 0.0
        %302 = vmatprep.subr.mxu0 0.0
        %303 = vmatpush1.msra.mxu0 0.0
        %304 = vmatprep.subr.mxu0 0.0
        %305 = vmatpush1.msra.mxu0 0.0
        %306 = vmatprep.subr.mxu0 0.0
        %307 = vmatpush1.msra.mxu0 0.0
        %308 = vmatprep.mubr.f32.mxu0 0.0
        %309 = vmatmul.mubr.f32.gmra.mrb[0].mxu0 %v233
        %v310 = vpop.f32.mrb[0].mxu0
        %v311 = vadd.f32 0.0, %v310
        %v312 = vpop.f32.mrb[0].mxu0
        %313 = vmatprep.mubr.f32.mxu0 0.0
        %314 = vmatmul.mubr.f32.gmra.mrb[0].mxu0 %v236
        %v315 = vpop.f32.mrb[0].mxu0
        %v316 = vadd.f32 0.0, %v315
        %v317 = vpop.f32.mrb[0].mxu0
        %318 = vmatprep.mubr.f32.mxu0 0.0
        %319 = vmatmul.mubr.f32.gmra.mrb[0].mxu0 %v239
        %v320 = vpop.f32.mrb[0].mxu0
        %v321 = vadd.f32 0.0, %v320
        %v322 = vpop.f32.mrb[0].mxu0
        %323 = vmatprep.mubr.f32.mxu0 0.0
        %324 = vmatmul.mubr.f32.gmra.mrb[0].mxu0 %v242
        %v325 = vpop.f32.mrb[0].mxu0
        %v326 = vadd.f32 0.0, %v325
        %v327 = vpop.f32.mrb[0].mxu0
        %328 = vdwg.mxu0
        %v329 = vld [vmem:[%s2] sm:$0xff]
        %v330 = vld [vmem:[%s2 + $0x8] sm:$0xff]
        %v331 = vld [vmem:[%s2 + $0x10] sm:$0xff]
        %v332 = vld [vmem:[%s2 + $0x18] sm:$0xff]
        %v333 = vmul.f32 %v329, %v311
        %v334 = vmul.f32 %v330, %v316
        %v335 = vmul.f32 %v331, %v321
        %v336 = vmul.f32 %v332, %v326
        %vm337 = vcmask 261120
        %v338 = vsel %vm337, %v333, 0.0
        %v339 = vsel %vm337, %v334, 0.0
        %v340 = vadd.f32 %v338, %v339
        %v341 = vsel %vm337, %v335, 0.0
        %v342 = vadd.f32 %v340, %v341
        %v343 = vsel %vm337, %v336, 0.0
        %v344 = vadd.f32 %v342, %v343
        %345 = vadd.xlane.f32.xlu0 %v344
        %v346 = vpop.xlane.xlu0 %345
        %v347 = vrot.slane %v346, 4
        %v348 = vadd.f32 %v346, %v347
        %v349 = vrot.slane %v348, 2
        %v350 = vadd.f32 %v348, %v349
        %v351 = vrot.slane %v350, 1
        %v352 = vadd.f32 %v350, %v351
        %s353 = vtos %v352
        %v354 = vstv %s353
        %355 = vst [vmem:[%s180] sm:$0xff] %v354
        %s356 = sand.u32 %s98, 1
        %s357 = scalar_lea.sflag [#allocation3], %s356
        %s358 = sand.u32 %s98, 1
        %s359 = smul.addr %s358, 8
        %s360 = scalar_lea.vmem [#allocation2], %s359
        // Predicated region
        $region33: #{tpu_custom_call.1} parent=31 // pred_check
          %p361 = pneg %p108
        $region34: #{tpu_custom_call.1} parent=31 // pred_check_branch
          %363 = sbr.rel (%p361) target = $region36
        $region35: #{tpu_custom_call.1} parent=31 // pred_region
          %s365 = ssub.s32 128, 128
          %366 = vsyncadd %s357, %s365
          %s367 = smul.addr %s17, 128
          %s368 = scalar_lea.hbm %s3, %s367
          %s370 = sshll.u32 %s360, 4
          %s371 = int_to_ptr.vmem [resolvable:$true] %s370
          %373 = dma.vmem_to_hbm [thread:$0]  %s371, 128, %s368, %s357
        $region36: #{tpu_custom_call.1} parent=31 // pred_fallthru
          _
      $region32: #{tpu_custom_call.1} parent=5 // pred_fallthru
        _
      %p374 = scmp.le.s32.totalorder 2, %s12
      // Predicated region
      $region37: #{tpu_custom_call.1} parent=5 // pred_check
        %p375 = pneg %p374
      $region38: #{tpu_custom_call.1} parent=5 // pred_check_branch
        %377 = sbr.rel (%p375) target = $region40
      $region39: #{tpu_custom_call.1} parent=5 // pred_region
        %s378 = ssub.s32 %s12, 2
        // Predicated region
        $region41: #{tpu_custom_call.1} parent=39 // pred_check
          %p379 = pneg %p114
        $region42: #{tpu_custom_call.1} parent=39 // pred_check_branch
          %381 = sbr.rel (%p379) target = $region44
        $region43: #{tpu_custom_call.1} parent=39 // pred_region
          %s382 = sand.u32 %s99, 1
          %s383 = scalar_lea.sflag [#allocation3], %s382
          %s384 = sand.u32 %s99, 1
          %s385 = smul.addr %s384, 8
          %s386 = scalar_lea.vmem [#allocation2], %s385
          %387 = dma.done %s383, 128
        $region44: #{tpu_custom_call.1} parent=39 // pred_fallthru
          _
      $region40: #{tpu_custom_call.1} parent=5 // pred_fallthru
        _
    $region6: #{tpu_custom_call.1} parent=1 // loop_footer
      %s16 = sadd.s32 1, %s12
    $region7: #{tpu_custom_call.1} parent=1 // loop_footer_branch
      %11 = sbr.rel target = $region3
    $region8: #{tpu_custom_call.1} parent=1 // loop_exit
      _
    %388 = vsyncpa [#allocation3], 1
    %s389 = scalar_lea.sflag [#allocation3], 1
    %390 = vsyncpa %s389, 1

</llo_original>
